<compile_context>
chip_gen: v7x
topology: tpu7x:2x2x1
jax: 0.10.0
libtpu: 0.0.40
codegen_flags: <defaults>
</compile_context>

<pallas_src>
import jax
import jax.numpy as jnp
from jax.experimental import pallas as pl
from jax.experimental.pallas import tpu as pltpu


def dqn_kernel(x_ref, w1_ref, b1_ref, w2_ref, b2_ref, out_ref):
    """One batch tile: out = relu(x @ w1 + b1) @ w2 + b2.

    x_ref : (TM, K)        f32    w1_ref: (K, H)        bf16
    b1_ref: (1, H)         f32    w2_ref: (H, OUT_PAD)  bf16
    b2_ref: (1, OUT_PAD)   f32    out_ref:(TM, OUT_PAD) bf16
    """
    x = x_ref[...].astype(w1_ref.dtype)                      # bf16 MXU operand
    # fc1: K=12-deep contraction (underfills any MXU but is <10% of FLOPs).
    h = jnp.dot(x, w1_ref[...], preferred_element_type=jnp.float32)
    h = jnp.maximum(h + b1_ref[...], 0.0)                    # f32 bias+ReLU on VPU
    # fc2: single full-H (512) contraction -> one well-filled MXU pass group.
    out = jnp.dot(h.astype(w2_ref.dtype), w2_ref[...],
                  preferred_element_type=jnp.float32) + b2_ref[...]
    out_ref[...] = out.astype(out_ref.dtype)                 # bf16 writeback


def _choose_tiling(batch):
    """Return (padded_batch, tm).

    Per-grid-step overhead dominates this us-scale kernel, so use as few steps
    as possible: two steps for small/medium B (one tile per v7x TensorCore),
    1024-row tiles for very large B.  Padding keeps tm a multiple of 16 so the
    bf16 output block satisfies sublane packing.
    """
    if batch <= 2048:
        bp = max(32, pl.cdiv(batch, 32) * 32)
        return bp, bp // 2
    tm = 1024
    return pl.cdiv(batch, tm) * tm, tm


def prepare_params(w1, b1, w2, b2):
    """Pad/cast parameters once, outside the per-call hot path.

    Weights stored (in, out) so the kernel computes x @ W.
    Returns ((w1_bf, b1_p, w2_bf, b2_p), num_actions).
    """
    hidden, num_actions = w2.shape
    out_pad = max(128, pl.cdiv(num_actions, 128) * 128)      # lane-dense output
    w1_bf = w1.astype(jnp.bfloat16)
    b1_p = b1.reshape(1, -1).astype(jnp.float32)
    w2_bf = jnp.pad(w2, ((0, 0), (0, out_pad - num_actions))).astype(jnp.bfloat16)
    b2_p = jnp.pad(b2.reshape(1, -1),
                   ((0, 0), (0, out_pad - num_actions))).astype(jnp.float32)
    return (w1_bf, b1_p, w2_bf, b2_p), num_actions


def dqn_forward(x, prepared, num_actions):
    """x: (B, 4*U_num) f32. Returns (B, num_actions) bf16."""
    w1_bf, b1_p, w2_bf, b2_p = prepared
    B, K = x.shape
    hidden = w1_bf.shape[1]
    out_pad = w2_bf.shape[1]

    bp, tm = _choose_tiling(B)
    x_p = x if bp == B else jnp.pad(x, ((0, bp - B), (0, 0)))

    out_padded = pl.pallas_call(
        dqn_kernel,
        out_shape=jax.ShapeDtypeStruct((bp, out_pad), jnp.bfloat16),
        grid=(bp // tm,),
        in_specs=[
            pl.BlockSpec((tm, K), lambda i: (i, 0)),         # batch-tiled x
            pl.BlockSpec((K, hidden), lambda i: (0, 0)),     # weights / biases:
            pl.BlockSpec((1, hidden), lambda i: (0, 0)),     # constant index_map
            pl.BlockSpec((hidden, out_pad), lambda i: (0, 0)),  # -> VMEM-resident
            pl.BlockSpec((1, out_pad), lambda i: (0, 0)),
        ],
        out_specs=pl.BlockSpec((tm, out_pad), lambda i: (i, 0)),
        compiler_params=pltpu.CompilerParams(
            dimension_semantics=("parallel",)),              # 2x on v7x megacore
    )(x_p, w1_bf, b1_p, w2_bf, b2_p)

    return out_padded[:B, :num_actions]


def init_params(key, u_num=3, num_actions=18):
    """PyTorch nn.Linear default init: U(-1/sqrt(fan_in), 1/sqrt(fan_in))."""
    in1 = 4 * u_num
    hid = 512
    k1, k2, k3, k4 = jax.random.split(key, 4)
    bound1 = 1.0 / jnp.sqrt(in1)
    bound2 = 1.0 / jnp.sqrt(hid)
    w1 = jax.random.uniform(k1, (in1, hid), jnp.float32, -bound1, bound1)
    b1 = jax.random.uniform(k2, (hid,), jnp.float32, -bound1, bound1)
    w2 = jax.random.uniform(k3, (hid, num_actions), jnp.float32, -bound2, bound2)
    b2 = jax.random.uniform(k4, (num_actions,), jnp.float32, -bound2, bound2)
    return w1, b1, w2, b2


if __name__ == "__main__":
    U_num = 3
    num_actions = 18
    batch = 256   # -> 2 grid steps of 128 rows (one per v7x TC)

    key = jax.random.PRNGKey(0)
    kx, kp = jax.random.split(key)
    x = jax.random.normal(kx, (batch, 4 * U_num), jnp.float32)
    w1, b1, w2, b2 = init_params(kp, U_num, num_actions)

    prepared, n_act = prepare_params(w1, b1, w2, b2)   # one-time pad/cast
    out = dqn_forward(x, prepared, n_act)
    out = jax.block_until_ready(out)

    # f32 reference; kernel uses bf16 MXU operands + bf16 output with f32
    # accumulation, so allow ~5e-2 deviation.
    ref = jnp.maximum(x @ w1 + b1[None, :], 0.0) @ w2 + b2[None, :]
    assert out.shape == (batch, num_actions)
    out_f32 = out.astype(jnp.float32)
    assert jnp.allclose(out_f32, ref, atol=5e-2, rtol=5e-2), float(
        jnp.max(jnp.abs(out_f32 - ref)))

    print("KERNEL_OK")
</pallas_src>

<mosaic_0001>
module attributes {stable_mosaic.version = 11 : i64} {
  func.func @dqn_kernel(%arg0: i32, %arg1: memref<128x12xf32, #tpu.memory_space<vmem>>, %arg2: memref<12x512xbf16, #tpu.memory_space<vmem>>, %arg3: memref<1x512xf32, #tpu.memory_space<vmem>>, %arg4: memref<512x128xbf16, #tpu.memory_space<vmem>>, %arg5: memref<1x128xf32, #tpu.memory_space<vmem>>, %arg6: memref<128x128xbf16, #tpu.memory_space<vmem>>) attributes {dimension_semantics = [#tpu.dimension_semantics<parallel>], iteration_bounds = array<i64: 2>, scalar_prefetch = 0 : i64, scratch_operands = 0 : i64, tpu.core_type = #tpu.core_type<tc>, window_params = [{transform_indices = @transform_0, window_bounds = array<i64: 128, 12>}, {pipeline_mode = #tpu.pipeline_mode<synchronous>, transform_indices = @transform_1, window_bounds = array<i64: 12, 512>}, {pipeline_mode = #tpu.pipeline_mode<synchronous>, transform_indices = @transform_2, window_bounds = array<i64: 1, 512>}, {pipeline_mode = #tpu.pipeline_mode<synchronous>, transform_indices = @transform_3, window_bounds = array<i64: 512, 128>}, {pipeline_mode = #tpu.pipeline_mode<synchronous>, transform_indices = @transform_4, window_bounds = array<i64: 1, 128>}, {transform_indices = @transform_5, window_bounds = array<i64: 128, 128>}]} {
    %c0 = arith.constant 0 : index
    %c0_0 = arith.constant 0 : index
    %0 = vector.load %arg1[%c0, %c0_0] : memref<128x12xf32, #tpu.memory_space<vmem>>, vector<128x12xf32>
    %1 = arith.truncf %0 : vector<128x12xf32> to vector<128x12xbf16>
    %c0_1 = arith.constant 0 : index
    %c0_2 = arith.constant 0 : index
    %2 = vector.load %arg2[%c0_1, %c0_2] : memref<12x512xbf16, #tpu.memory_space<vmem>>, vector<12x512xbf16>
    %cst = arith.constant dense<0.000000e+00> : vector<128x512xf32>
    %3 = tpu.matmul %1, %2, %cst {dimension_numbers = #tpu.dot_dimension_numbers<[1], [0], [0], [1], [0, 0, 1, 1], [], []>} : vector<128x12xbf16>, vector<12x512xbf16>, vector<128x512xf32> -> vector<128x512xf32>
    %c0_3 = arith.constant 0 : index
    %c0_4 = arith.constant 0 : index
    %4 = vector.load %arg3[%c0_3, %c0_4] : memref<1x512xf32, #tpu.memory_space<vmem>>, vector<1x512xf32>
    %5 = vector.broadcast %4 : vector<1x512xf32> to vector<128x512xf32>
    %6 = arith.addf %3, %5 : vector<128x512xf32>
    %cst_5 = arith.constant 0.000000e+00 : f32
    %7 = vector.broadcast %cst_5 : f32 to vector<128x512xf32>
    %8 = arith.maximumf %6, %7 : vector<128x512xf32>
    %9 = arith.truncf %8 : vector<128x512xf32> to vector<128x512xbf16>
    %c0_6 = arith.constant 0 : index
    %c0_7 = arith.constant 0 : index
    %10 = vector.load %arg4[%c0_6, %c0_7] : memref<512x128xbf16, #tpu.memory_space<vmem>>, vector<512x128xbf16>
    %cst_8 = arith.constant dense<0.000000e+00> : vector<128x128xf32>
    %11 = tpu.matmul %9, %10, %cst_8 {dimension_numbers = #tpu.dot_dimension_numbers<[1], [0], [0], [1], [0, 0, 1, 1], [], []>} : vector<128x512xbf16>, vector<512x128xbf16>, vector<128x128xf32> -> vector<128x128xf32>
    %c0_9 = arith.constant 0 : index
    %c0_10 = arith.constant 0 : index
    %12 = vector.load %arg5[%c0_9, %c0_10] : memref<1x128xf32, #tpu.memory_space<vmem>>, vector<1x128xf32>
    %13 = vector.broadcast %12 : vector<1x128xf32> to vector<128x128xf32>
    %14 = arith.addf %11, %13 : vector<128x128xf32>
    %15 = arith.truncf %14 : vector<128x128xf32> to vector<128x128xbf16>
    %c0_11 = arith.constant 0 : index
    %c0_12 = arith.constant 0 : index
    %16 = vector.load %arg6[%c0_11, %c0_12] : memref<128x128xbf16, #tpu.memory_space<vmem>>, vector<128x128xbf16>
    tpu.vector_store %arg6[%c0_11, %c0_12], %15 {strides = array<i32>} : memref<128x128xbf16, #tpu.memory_space<vmem>>, vector<128x128xbf16>,
    return
  }
  func.func @transform_0(%arg0: i32) -> (i32, i32) {
    %c0_i32 = arith.constant 0 : i32
    %c0_i32_0 = arith.constant 0 : i32
    return %arg0, %c0_i32 : i32, i32
  }
  func.func @transform_1(%arg0: i32) -> (i32, i32) {
    %c0_i32 = arith.constant 0 : i32
    %c0_i32_0 = arith.constant 0 : i32
    %c0_i32_1 = arith.constant 0 : i32
    return %c0_i32, %c0_i32_0 : i32, i32
  }
  func.func @transform_2(%arg0: i32) -> (i32, i32) {
    %c0_i32 = arith.constant 0 : i32
    %c0_i32_0 = arith.constant 0 : i32
    %c0_i32_1 = arith.constant 0 : i32
    return %c0_i32, %c0_i32_0 : i32, i32
  }
  func.func @transform_3(%arg0: i32) -> (i32, i32) {
    %c0_i32 = arith.constant 0 : i32
    %c0_i32_0 = arith.constant 0 : i32
    %c0_i32_1 = arith.constant 0 : i32
    return %c0_i32, %c0_i32_0 : i32, i32
  }
  func.func @transform_4(%arg0: i32) -> (i32, i32) {
    %c0_i32 = arith.constant 0 : i32
    %c0_i32_0 = arith.constant 0 : i32
    %c0_i32_1 = arith.constant 0 : i32
    return %c0_i32, %c0_i32_0 : i32, i32
  }
  func.func @transform_5(%arg0: i32) -> (i32, i32) {
    %c0_i32 = arith.constant 0 : i32
    %c0_i32_0 = arith.constant 0 : i32
    return %arg0, %c0_i32 : i32, i32
  }
}

</mosaic_0001>

<llo_original>
// kernel: tpu_custom_call.1
$region0: #{tpu_custom_call.1}
  #allocation0 [shape = 'u32[]', space=smem, size = 0x4, offset = 0x4, fixed_abs, tag = 'smem constant byte address 0x4 - core index']
  #allocation1 [shape = 'u32[144,128]{1,0:T(1,128)}', space=vmem, size = 0x12000, scoped, tag = 'internal scratch']
  %s0 = inlined_call_operand.vmem [shape: f32[256,12], index: 0, kind: input, shape index: {}]
  %s1 = inlined_call_operand.vmem [shape: bf16[12,512], index: 1, kind: input, shape index: {}]
  %s2 = inlined_call_operand.vmem [shape: f32[1,512], index: 2, kind: input, shape index: {}]
  %s3 = inlined_call_operand.vmem [shape: bf16[512,128], index: 3, kind: input, shape index: {}]
  %s4 = inlined_call_operand.vmem [shape: f32[1,128], index: 4, kind: input, shape index: {}]
  %s5 = inlined_call_operand.hbm [shape: bf16[256,128], index: 5, kind: output, shape index: {}]
  %s6 = sld [smem:[#allocation0]]
  $region53: #{tpu_custom_call.1} parent=0
    _
  %s8 = ssub.s32 1, %s6
  %s9 = scalar_select 0, %s8, %s6
  $region1: #{tpu_custom_call.1} parent=0
    #allocation2 [shape = 'u8[65536]{0}', space=vmem, size = 0x10000, scoped, tag = 'output window, operand 0']
    #allocation3 [shape = 's32[2]{0}', space=sflag, size = 0x8, scoped, tag = 'scoped memory for tpu_custom_call.1']
    %10 = vsyncpa [#allocation3], 0
    %s11 = scalar_lea.sflag [#allocation3], 1
    %12 = vsyncpa %s11, 0
    loop: start=0, step=1, limit=4
    $region2: #{tpu_custom_call.1} parent=1 // loop_pre_header
      _
    $region3: #{tpu_custom_call.1} parent=1 // loop_header
      %s14 = sphi 0, %s18
      %p15 = scmp.ge.s32.totalorder %s14, 4
      %s24 = sphi 0, %s26
      %s27 = sphi 0, %s24
      %s28 = sphi 0, %s27
      %s44 = sphi 0, %s28
      %s48 = sphi 0, %s48
      %s50 = sphi 0, %s48
      %s51 = sphi 0, %s50
      %s65 = sphi 0, %s51
      %s69 = sphi 0, %s69
      %s71 = sphi 0, %s69
      %s72 = sphi 0, %s71
      %s86 = sphi 0, %s72
      %s90 = sphi 0, %s90
      %s92 = sphi 0, %s90
      %s93 = sphi 0, %s92
      %s107 = sphi 0, %s93
      %s111 = sphi 0, %s111
      %s113 = sphi 0, %s111
      %s114 = sphi 0, %s113
      %s128 = sphi 0, %s114
      %s134 = sphi 0, %s136
      %s137 = sphi 0, %s134
      %s138 = sphi 0, %s137
      %s154 = sphi 0, %s138
    $region4: #{tpu_custom_call.1} parent=1 // loop_header_branch
      %17 = sbr.rel (%p15) target = $region8
    $region5: #{tpu_custom_call.1} parent=1 // loop_body
      %s19 = ssub.s32 %s14, 1
      %s20 = ssub.s32 %s14, 2
      %s21 = sadd.s32 %s14, 1
      %s22 = ssub.s32 %s14, %s21
      %p23 = scmp.eq.s32.totalorder %s22, 0
      %s25 = sadd.s32 %s24, 1
      %s26 = scalar_select %p23, %s24, %s25
      %p29 = pneg %p23
      %p30 = scmp.eq.s32.totalorder %s14, 1
      %p31 = por %p29, %p30
      %p32 = scmp.ne.s32.totalorder %s24, %s27
      %p33 = scmp.eq.s32.totalorder %s14, 0
      %p34 = por %p32, %p33
      %p35 = scmp.ne.s32.totalorder %s24, %s27
      %p36 = scmp.eq.s32.totalorder %s19, 1
      %p37 = por %p35, %p36
      %p38 = scmp.ne.s32.totalorder %s27, %s28
      %p39 = scmp.eq.s32.totalorder %s19, 0
      %p40 = por %p38, %p39
      %p41 = scmp.ne.s32.totalorder %s27, %s28
      %p42 = scmp.eq.s32.totalorder %s20, 1
      %p43 = por %p41, %p42
      %p45 = scmp.ne.s32.totalorder %s28, %s44
      %p46 = scmp.eq.s32.totalorder %s20, 0
      %p47 = por %p45, %p46
      %s49 = sadd.s32 %s48, 1
      %p52 = scmp.eq.s32.totalorder %s14, 1
      %p53 = scmp.ne.s32.totalorder %s48, %s50
      %p54 = scmp.eq.s32.totalorder %s14, 0
      %p55 = por %p53, %p54
      %p56 = scmp.ne.s32.totalorder %s48, %s50
      %p57 = scmp.eq.s32.totalorder %s19, 1
      %p58 = por %p56, %p57
      %p59 = scmp.ne.s32.totalorder %s50, %s51
      %p60 = scmp.eq.s32.totalorder %s19, 0
      %p61 = por %p59, %p60
      %p62 = scmp.ne.s32.totalorder %s50, %s51
      %p63 = scmp.eq.s32.totalorder %s20, 1
      %p64 = por %p62, %p63
      %p66 = scmp.ne.s32.totalorder %s51, %s65
      %p67 = scmp.eq.s32.totalorder %s20, 0
      %p68 = por %p66, %p67
      %s70 = sadd.s32 %s69, 1
      %p73 = scmp.eq.s32.totalorder %s14, 1
      %p74 = scmp.ne.s32.totalorder %s69, %s71
      %p75 = scmp.eq.s32.totalorder %s14, 0
      %p76 = por %p74, %p75
      %p77 = scmp.ne.s32.totalorder %s69, %s71
      %p78 = scmp.eq.s32.totalorder %s19, 1
      %p79 = por %p77, %p78
      %p80 = scmp.ne.s32.totalorder %s71, %s72
      %p81 = scmp.eq.s32.totalorder %s19, 0
      %p82 = por %p80, %p81
      %p83 = scmp.ne.s32.totalorder %s71, %s72
      %p84 = scmp.eq.s32.totalorder %s20, 1
      %p85 = por %p83, %p84
      %p87 = scmp.ne.s32.totalorder %s72, %s86
      %p88 = scmp.eq.s32.totalorder %s20, 0
      %p89 = por %p87, %p88
      %s91 = sadd.s32 %s90, 1
      %p94 = scmp.eq.s32.totalorder %s14, 1
      %p95 = scmp.ne.s32.totalorder %s90, %s92
      %p96 = scmp.eq.s32.totalorder %s14, 0
      %p97 = por %p95, %p96
      %p98 = scmp.ne.s32.totalorder %s90, %s92
      %p99 = scmp.eq.s32.totalorder %s19, 1
      %p100 = por %p98, %p99
      %p101 = scmp.ne.s32.totalorder %s92, %s93
      %p102 = scmp.eq.s32.totalorder %s19, 0
      %p103 = por %p101, %p102
      %p104 = scmp.ne.s32.totalorder %s92, %s93
      %p105 = scmp.eq.s32.totalorder %s20, 1
      %p106 = por %p104, %p105
      %p108 = scmp.ne.s32.totalorder %s93, %s107
      %p109 = scmp.eq.s32.totalorder %s20, 0
      %p110 = por %p108, %p109
      %s112 = sadd.s32 %s111, 1
      %p115 = scmp.eq.s32.totalorder %s14, 1
      %p116 = scmp.ne.s32.totalorder %s111, %s113
      %p117 = scmp.eq.s32.totalorder %s14, 0
      %p118 = por %p116, %p117
      %p119 = scmp.ne.s32.totalorder %s111, %s113
      %p120 = scmp.eq.s32.totalorder %s19, 1
      %p121 = por %p119, %p120
      %p122 = scmp.ne.s32.totalorder %s113, %s114
      %p123 = scmp.eq.s32.totalorder %s19, 0
      %p124 = por %p122, %p123
      %p125 = scmp.ne.s32.totalorder %s113, %s114
      %p126 = scmp.eq.s32.totalorder %s20, 1
      %p127 = por %p125, %p126
      %p129 = scmp.ne.s32.totalorder %s114, %s128
      %p130 = scmp.eq.s32.totalorder %s20, 0
      %p131 = por %p129, %p130
      %s132 = ssub.s32 %s14, %s21
      %p133 = scmp.eq.s32.totalorder %s132, 0
      %s135 = sadd.s32 %s134, 1
      %s136 = scalar_select %p133, %s134, %s135
      %p139 = pneg %p133
      %p140 = scmp.eq.s32.totalorder %s14, 1
      %p141 = por %p139, %p140
      %p142 = scmp.ne.s32.totalorder %s134, %s137
      %p143 = scmp.eq.s32.totalorder %s14, 0
      %p144 = por %p142, %p143
      %p145 = scmp.ne.s32.totalorder %s134, %s137
      %p146 = scmp.eq.s32.totalorder %s19, 1
      %p147 = por %p145, %p146
      %p148 = scmp.ne.s32.totalorder %s137, %s138
      %p149 = scmp.eq.s32.totalorder %s19, 0
      %p150 = por %p148, %p149
      %p151 = scmp.ne.s32.totalorder %s137, %s138
      %p152 = scmp.eq.s32.totalorder %s20, 1
      %p153 = por %p151, %p152
      %p155 = scmp.ne.s32.totalorder %s138, %s154
      %p156 = scmp.eq.s32.totalorder %s20, 0
      %p157 = por %p155, %p156
      %p158 = scmp.le.s32.totalorder 1, %s14
      %p159 = scmp.lt.s32.totalorder %s14, 3
      %p160 = pnand %p158, %p159
      %p161 = pneg %p160
      // Predicated region
      $region9: #{tpu_custom_call.1} parent=5 // pred_check
        _
      $region10: #{tpu_custom_call.1} parent=5 // pred_check_branch
        %163 = sbr.rel (%p160) target = $region12
      $region11: #{tpu_custom_call.1} parent=5 // pred_region
        %s164 = ssub.s32 %s14, 1
        // Predicated region
        $region13: #{tpu_custom_call.1} parent=11 // pred_check
          %p165 = pneg %p61
        $region14: #{tpu_custom_call.1} parent=11 // pred_check_branch
          %167 = sbr.rel (%p165) target = $region16
        $region15: #{tpu_custom_call.1} parent=11 // pred_region
          _
        $region16: #{tpu_custom_call.1} parent=11 // pred_fallthru
          _
        // Predicated region
        $region17: #{tpu_custom_call.1} parent=11 // pred_check
          %p168 = pneg %p82
        $region18: #{tpu_custom_call.1} parent=11 // pred_check_branch
          %170 = sbr.rel (%p168) target = $region20
        $region19: #{tpu_custom_call.1} parent=11 // pred_region
          _
        $region20: #{tpu_custom_call.1} parent=11 // pred_fallthru
          _
        // Predicated region
        $region21: #{tpu_custom_call.1} parent=11 // pred_check
          %p171 = pneg %p103
        $region22: #{tpu_custom_call.1} parent=11 // pred_check_branch
          %173 = sbr.rel (%p171) target = $region24
        $region23: #{tpu_custom_call.1} parent=11 // pred_region
          _
        $region24: #{tpu_custom_call.1} parent=11 // pred_fallthru
          _
        // Predicated region
        $region25: #{tpu_custom_call.1} parent=11 // pred_check
          %p174 = pneg %p124
        $region26: #{tpu_custom_call.1} parent=11 // pred_check_branch
          %176 = sbr.rel (%p174) target = $region28
        $region27: #{tpu_custom_call.1} parent=11 // pred_region
          _
        $region28: #{tpu_custom_call.1} parent=11 // pred_fallthru
          _
      $region12: #{tpu_custom_call.1} parent=5 // pred_fallthru
        _
      %p177 = scmp.lt.s32.totalorder %s14, 2
      // Predicated region
      $region29: #{tpu_custom_call.1} parent=5 // pred_check
        %p178 = pneg %p177
      $region30: #{tpu_custom_call.1} parent=5 // pred_check_branch
        %180 = sbr.rel (%p178) target = $region32
      $region31: #{tpu_custom_call.1} parent=5 // pred_region
        // Predicated region
        $region33: #{tpu_custom_call.1} parent=31 // pred_check
          %p181 = pneg %p34
        $region34: #{tpu_custom_call.1} parent=31 // pred_check_branch
          %183 = sbr.rel (%p181) target = $region36
        $region35: #{tpu_custom_call.1} parent=31 // pred_region
          %s184 = smul.u32 16, %s14
          %p185 = scmp.lt.s32.totalorder %s184, 31
          %s186 = scalar_select %p185, %s184, 31
          %s187 = smul.addr %s186, 8
          %s188 = scalar_lea.vmem %s0, %s187
          %s189 = smul.u32 16, %s14
        $region36: #{tpu_custom_call.1} parent=31 // pred_fallthru
          _
      $region32: #{tpu_custom_call.1} parent=5 // pred_fallthru
        _
      %p190 = scmp.le.s32.totalorder 1, %s14
      %p191 = scmp.lt.s32.totalorder %s14, 3
      %p192 = pnand %p190, %p191
      %p193 = pneg %p192
      // Predicated region
      $region37: #{tpu_custom_call.1} parent=5 // pred_check
        _
      $region38: #{tpu_custom_call.1} parent=5 // pred_check_branch
        %195 = sbr.rel (%p192) target = $region40
      $region39: #{tpu_custom_call.1} parent=5 // pred_region
        %s196 = ssub.s32 %s14, 1
        %s197 = smul.u32 16, %s19
        %p198 = scmp.lt.s32.totalorder %s197, 31
        %s199 = scalar_select %p198, %s197, 31
        %s200 = smul.addr %s199, 8
        %s201 = scalar_lea.vmem %s0, %s200
        %p202 = pneg %p40
        %p203 = pneg %p37
        %p204 = pneg %p61
        %p205 = pneg %p58
        %p206 = pneg %p82
        %p207 = pneg %p79
        %p208 = pneg %p103
        %p209 = pneg %p100
        %p210 = pneg %p124
        %p211 = pneg %p121
        %p212 = pneg %p150
        %p213 = pneg %p147
        %s214 = sand.u32 %s137, 1
        %s215 = scalar_lea.sflag [#allocation3], %s214
        %s216 = sand.u32 %s137, 1
        %s217 = smul.addr %s216, 64
        %s218 = scalar_lea.vmem [#allocation2], %s217
        %s219 = smul.u32 16, %s19
        %p220 = scmp.lt.s32.totalorder %s219, 31
        %s221 = scalar_select %p220, %s219, 31
        %s222 = smul.addr %s221, 8
        %s223 = scalar_lea.vmem %s0, %s222
        %s224 = smul.u32 16, %s19
        %s225 = smul.u32 16, %s19
        %v227 = vld [vmem:[%s223] sm:$0xff]
        %v228 = vld [vmem:[%s223 + $0x8] sm:$0xff]
        %v229 = vld [vmem:[%s223 + $0x10] sm:$0xff]
        %v230 = vld [vmem:[%s223 + $0x18] sm:$0xff]
        %v231 = vld [vmem:[%s223 + $0x20] sm:$0xff]
        %v232 = vld [vmem:[%s223 + $0x28] sm:$0xff]
        %v233 = vld [vmem:[%s223 + $0x30] sm:$0xff]
        %v234 = vld [vmem:[%s223 + $0x38] sm:$0xff]
        %v235 = vld [vmem:[%s223 + $0x40] sm:$0xff]
        %v236 = vld [vmem:[%s223 + $0x48] sm:$0xff]
        %v237 = vld [vmem:[%s223 + $0x50] sm:$0xff]
        %v238 = vld [vmem:[%s223 + $0x58] sm:$0xff]
        %v239 = vld [vmem:[%s223 + $0x60] sm:$0xff]
        %v240 = vld [vmem:[%s223 + $0x68] sm:$0xff]
        %v241 = vld [vmem:[%s223 + $0x70] sm:$0xff]
        %v242 = vld [vmem:[%s223 + $0x78] sm:$0xff]
        %v243 = vpack.c.bf16 %v228, %v227
        %v244 = vpack.c.bf16 %v230, %v229
        %v245 = vpack.c.bf16 %v232, %v231
        %v246 = vpack.c.bf16 %v234, %v233
        %v247 = vpack.c.bf16 %v236, %v235
        %v248 = vpack.c.bf16 %v238, %v237
        %v249 = vpack.c.bf16 %v240, %v239
        %v250 = vpack.c.bf16 %v242, %v241
        %v251 = vld [vmem:[%s1] sm:$0xff]
        %v252 = vld [vmem:[%s1 + $0x8] sm:$0xff]
        %v253 = vld [vmem:[%s1 + $0x10] sm:$0x33]
        %v254 = vld [vmem:[%s1 + $0x18] sm:$0x33]
        %v255 = vld [vmem:[%s2] sm:$0xf]
        %v257 = vlaneseq
        %v258 = vshrl.u32 %v257, 7
        %v259 = vsub.s32 0, %v258
        %v260 = vrot.slane %v255, %v259
        %v261 = vlaneseq
        %v262 = vshrl.u32 %v261, 7
        %v263 = vsub.s32 1, %v262
        %v264 = vrot.slane %v255, %v263
        %v265 = vlaneseq
        %v266 = vshrl.u32 %v265, 7
        %v267 = vsub.s32 2, %v266
        %v268 = vrot.slane %v255, %v267
        %v269 = vlaneseq
        %v270 = vshrl.u32 %v269, 7
        %v271 = vsub.s32 3, %v270
        %v272 = vrot.slane %v255, %v271
        %v281 = vunpack.c.l.b16 %v251
        %v282 = vunpack.c.h.b16 %v251
        %v283 = vunpack.c.l.b16 %v252
        %v284 = vunpack.c.h.b16 %v252
        %v285 = vunpack.c.l.b16 %v253
        %v286 = vunpack.c.h.b16 %v253
        %v287 = vunpack.c.l.b16 %v254
        %v288 = vunpack.c.h.b16 %v254
        %v289 = vpack.c.b16 %v285, %v281
        %v290 = vpack.c.b16 %v286, %v282
        %v291 = vpack.c.b16 %v287, %v283
        %v292 = vpack.c.b16 %v288, %v284
        %vm293 = vcmask 97280
        %v295 = vsel %vm293, %v243, 0
        %v298 = vsel %vm293, %v244, 0
        %v301 = vsel %vm293, %v245, 0
        %v304 = vsel %vm293, %v246, 0
        %v307 = vsel %vm293, %v247, 0
        %v310 = vsel %vm293, %v248, 0
        %v313 = vsel %vm293, %v249, 0
        %v316 = vsel %vm293, %v250, 0
        %vm318 = vcmask 1045504
        %v320 = vsel %vm318, %v289, 0
        %v323 = vsel %vm318, %v290, 0
        %v326 = vsel %vm318, %v291, 0
        %v329 = vsel %vm318, %v292, 0
        %331 = vmatprep.subr.bf16.mxu0 %v323
        %332 = vmatpush1.bf16.msra.mxu0 %v320
        %333 = vmatprep.subr.bf16.mxu0 0
        %334 = vmatpush1.bf16.msra.mxu0 0
        %335 = vmatprep.subr.bf16.mxu0 0
        %336 = vmatpush1.bf16.msra.mxu0 0
        %337 = vmatprep.subr.bf16.mxu0 0
        %338 = vmatpush1.bf16.msra.mxu0 0
        %339 = vmatprep.subr.bf16.mxu0 0
        %340 = vmatpush1.bf16.msra.mxu0 0
        %341 = vmatprep.subr.bf16.mxu0 0
        %342 = vmatpush1.bf16.msra.mxu0 0
        %343 = vmatprep.subr.bf16.mxu0 0
        %344 = vmatpush1.bf16.msra.mxu0 0
        %345 = vmatprep.subr.bf16.mxu0 0
        %346 = vmatpush1.bf16.msra.mxu0 0
        %347 = vmatprep.subr.bf16.mxu0 0
        %348 = vmatpush1.bf16.msra.mxu0 0
        %349 = vmatprep.subr.bf16.mxu0 0
        %350 = vmatpush1.bf16.msra.mxu0 0
        %351 = vmatprep.subr.bf16.mxu0 0
        %352 = vmatpush1.bf16.msra.mxu0 0
        %353 = vmatprep.subr.bf16.mxu0 0
        %354 = vmatpush1.bf16.msra.mxu0 0
        %355 = vmatprep.subr.bf16.mxu0 0
        %356 = vmatpush1.bf16.msra.mxu0 0
        %357 = vmatprep.subr.bf16.mxu0 0
        %358 = vmatpush1.bf16.msra.mxu0 0
        %359 = vmatprep.subr.bf16.mxu0 0
        %360 = vmatpush1.bf16.msra.mxu0 0
        %361 = vmatprep.subr.bf16.mxu0 0
        %362 = vmatpush1.bf16.msra.mxu0 0
        %363 = vmatprep.mubr.bf16.mxu0 0
        %364 = vmatmul.mubr.bf16.gmra.mrb[0].mxu0 %v295
        %v365 = vpop.f32.mrb[0].mxu0
        %v366 = vadd.f32 %v260, %v365
        %v367 = vpop.f32.mrb[0].mxu0
        %v368 = vadd.f32 %v264, %v367
        %v369 = vpop.f32.mrb[0].mxu0
        %v370 = vadd.f32 %v260, %v369
        %v371 = vpop.f32.mrb[0].mxu0
        %v372 = vadd.f32 %v264, %v371
        %373 = vmatprep.mubr.bf16.mxu0 0
        %374 = vmatmul.mubr.bf16.gmra.mrb[0].mxu0 %v298
        %v375 = vpop.f32.mrb[0].mxu0
        %v376 = vadd.f32 %v260, %v375
        %v377 = vpop.f32.mrb[0].mxu0
        %v378 = vadd.f32 %v264, %v377
        %v379 = vpop.f32.mrb[0].mxu0
        %v380 = vadd.f32 %v260, %v379
        %v381 = vpop.f32.mrb[0].mxu0
        %v382 = vadd.f32 %v264, %v381
        %383 = vmatprep.mubr.bf16.mxu0 0
        %384 = vmatmul.mubr.bf16.gmra.mrb[0].mxu0 %v301
        %v385 = vpop.f32.mrb[0].mxu0
        %v386 = vadd.f32 %v260, %v385
        %v387 = vpop.f32.mrb[0].mxu0
        %v388 = vadd.f32 %v264, %v387
        %v389 = vpop.f32.mrb[0].mxu0
        %v390 = vadd.f32 %v260, %v389
        %v391 = vpop.f32.mrb[0].mxu0
        %v392 = vadd.f32 %v264, %v391
        %393 = vmatprep.mubr.bf16.mxu0 0
        %394 = vmatmul.mubr.bf16.gmra.mrb[0].mxu0 %v304
        %v395 = vpop.f32.mrb[0].mxu0
        %v396 = vadd.f32 %v260, %v395
        %v397 = vpop.f32.mrb[0].mxu0
        %v398 = vadd.f32 %v264, %v397
        %v399 = vpop.f32.mrb[0].mxu0
        %v400 = vadd.f32 %v260, %v399
        %v401 = vpop.f32.mrb[0].mxu0
        %v402 = vadd.f32 %v264, %v401
        %403 = vmatprep.mubr.bf16.mxu0 0
        %404 = vmatmul.mubr.bf16.gmra.mrb[0].mxu0 %v307
        %v405 = vpop.f32.mrb[0].mxu0
        %v406 = vadd.f32 %v260, %v405
        %v407 = vpop.f32.mrb[0].mxu0
        %v408 = vadd.f32 %v264, %v407
        %v409 = vpop.f32.mrb[0].mxu0
        %v410 = vadd.f32 %v260, %v409
        %v411 = vpop.f32.mrb[0].mxu0
        %v412 = vadd.f32 %v264, %v411
        %413 = vmatprep.mubr.bf16.mxu0 0
        %414 = vmatmul.mubr.bf16.gmra.mrb[0].mxu0 %v310
        %v415 = vpop.f32.mrb[0].mxu0
        %v416 = vadd.f32 %v260, %v415
        %v417 = vpop.f32.mrb[0].mxu0
        %v418 = vadd.f32 %v264, %v417
        %v419 = vpop.f32.mrb[0].mxu0
        %v420 = vadd.f32 %v260, %v419
        %v421 = vpop.f32.mrb[0].mxu0
        %v422 = vadd.f32 %v264, %v421
        %423 = vmatprep.mubr.bf16.mxu0 0
        %424 = vmatmul.mubr.bf16.gmra.mrb[0].mxu0 %v313
        %v425 = vpop.f32.mrb[0].mxu0
        %v426 = vadd.f32 %v260, %v425
        %v427 = vpop.f32.mrb[0].mxu0
        %v428 = vadd.f32 %v264, %v427
        %v429 = vpop.f32.mrb[0].mxu0
        %v430 = vadd.f32 %v260, %v429
        %v431 = vpop.f32.mrb[0].mxu0
        %v432 = vadd.f32 %v264, %v431
        %433 = vmatprep.mubr.bf16.mxu0 0
        %434 = vmatmul.mubr.bf16.gmra.mrb[0].mxu0 %v316
        %v435 = vpop.f32.mrb[0].mxu0
        %v436 = vadd.f32 %v260, %v435
        %v437 = vpop.f32.mrb[0].mxu0
        %v438 = vadd.f32 %v264, %v437
        %v439 = vpop.f32.mrb[0].mxu0
        %v440 = vadd.f32 %v260, %v439
        %v441 = vpop.f32.mrb[0].mxu0
        %v442 = vadd.f32 %v264, %v441
        %443 = vdwg.mxu0
        %444 = vmatprep.subr.bf16.mxu0 %v329
        %445 = vmatpush1.bf16.msra.mxu0 %v326
        %446 = vmatprep.subr.bf16.mxu0 0
        %447 = vmatpush1.bf16.msra.mxu0 0
        %448 = vmatprep.subr.bf16.mxu0 0
        %449 = vmatpush1.bf16.msra.mxu0 0
        %450 = vmatprep.subr.bf16.mxu0 0
        %451 = vmatpush1.bf16.msra.mxu0 0
        %452 = vmatprep.subr.bf16.mxu0 0
        %453 = vmatpush1.bf16.msra.mxu0 0
        %454 = vmatprep.subr.bf16.mxu0 0
        %455 = vmatpush1.bf16.msra.mxu0 0
        %456 = vmatprep.subr.bf16.mxu0 0
        %457 = vmatpush1.bf16.msra.mxu0 0
        %458 = vmatprep.subr.bf16.mxu0 0
        %459 = vmatpush1.bf16.msra.mxu0 0
        %460 = vmatprep.subr.bf16.mxu0 0
        %461 = vmatpush1.bf16.msra.mxu0 0
        %462 = vmatprep.subr.bf16.mxu0 0
        %463 = vmatpush1.bf16.msra.mxu0 0
        %464 = vmatprep.subr.bf16.mxu0 0
        %465 = vmatpush1.bf16.msra.mxu0 0
        %466 = vmatprep.subr.bf16.mxu0 0
        %467 = vmatpush1.bf16.msra.mxu0 0
        %468 = vmatprep.subr.bf16.mxu0 0
        %469 = vmatpush1.bf16.msra.mxu0 0
        %470 = vmatprep.subr.bf16.mxu0 0
        %471 = vmatpush1.bf16.msra.mxu0 0
        %472 = vmatprep.subr.bf16.mxu0 0
        %473 = vmatpush1.bf16.msra.mxu0 0
        %474 = vmatprep.subr.bf16.mxu0 0
        %475 = vmatpush1.bf16.msra.mxu0 0
        %476 = vmatprep.mubr.bf16.mxu0 0
        %477 = vmatmul.mubr.bf16.gmra.mrb[0].mxu0 %v295
        %v478 = vpop.f32.mrb[0].mxu0
        %v479 = vadd.f32 %v268, %v478
        %v480 = vpop.f32.mrb[0].mxu0
        %v481 = vadd.f32 %v272, %v480
        %v482 = vpop.f32.mrb[0].mxu0
        %v483 = vadd.f32 %v268, %v482
        %v484 = vpop.f32.mrb[0].mxu0
        %v485 = vadd.f32 %v272, %v484
        %486 = vmatprep.mubr.bf16.mxu0 0
        %487 = vmatmul.mubr.bf16.gmra.mrb[0].mxu0 %v298
        %v488 = vpop.f32.mrb[0].mxu0
        %v489 = vadd.f32 %v268, %v488
        %v490 = vpop.f32.mrb[0].mxu0
        %v491 = vadd.f32 %v272, %v490
        %v492 = vpop.f32.mrb[0].mxu0
        %v493 = vadd.f32 %v268, %v492
        %v494 = vpop.f32.mrb[0].mxu0
        %v495 = vadd.f32 %v272, %v494
        %496 = vmatprep.mubr.bf16.mxu0 0
        %497 = vmatmul.mubr.bf16.gmra.mrb[0].mxu0 %v301
        %v498 = vpop.f32.mrb[0].mxu0
        %v499 = vadd.f32 %v268, %v498
        %v500 = vpop.f32.mrb[0].mxu0
        %v501 = vadd.f32 %v272, %v500
        %v502 = vpop.f32.mrb[0].mxu0
        %v503 = vadd.f32 %v268, %v502
        %v504 = vpop.f32.mrb[0].mxu0
        %v505 = vadd.f32 %v272, %v504
        %506 = vmatprep.mubr.bf16.mxu0 0
        %507 = vmatmul.mubr.bf16.gmra.mrb[0].mxu0 %v304
        %v508 = vpop.f32.mrb[0].mxu0
        %v509 = vadd.f32 %v268, %v508
        %v510 = vpop.f32.mrb[0].mxu0
        %v511 = vadd.f32 %v272, %v510
        %v512 = vpop.f32.mrb[0].mxu0
        %v513 = vadd.f32 %v268, %v512
        %v514 = vpop.f32.mrb[0].mxu0
        %v515 = vadd.f32 %v272, %v514
        %516 = vmatprep.mubr.bf16.mxu0 0
        %517 = vmatmul.mubr.bf16.gmra.mrb[0].mxu0 %v307
        %v518 = vpop.f32.mrb[0].mxu0
        %v519 = vadd.f32 %v268, %v518
        %v520 = vpop.f32.mrb[0].mxu0
        %v521 = vadd.f32 %v272, %v520
        %v522 = vpop.f32.mrb[0].mxu0
        %v523 = vadd.f32 %v268, %v522
        %v524 = vpop.f32.mrb[0].mxu0
        %v525 = vadd.f32 %v272, %v524
        %526 = vmatprep.mubr.bf16.mxu0 0
        %527 = vmatmul.mubr.bf16.gmra.mrb[0].mxu0 %v310
        %v528 = vpop.f32.mrb[0].mxu0
        %v529 = vadd.f32 %v268, %v528
        %v530 = vpop.f32.mrb[0].mxu0
        %v531 = vadd.f32 %v272, %v530
        %v532 = vpop.f32.mrb[0].mxu0
        %v533 = vadd.f32 %v268, %v532
        %v534 = vpop.f32.mrb[0].mxu0
        %v535 = vadd.f32 %v272, %v534
        %536 = vmatprep.mubr.bf16.mxu0 0
        %537 = vmatmul.mubr.bf16.gmra.mrb[0].mxu0 %v313
        %v538 = vpop.f32.mrb[0].mxu0
        %v539 = vadd.f32 %v268, %v538
        %v540 = vpop.f32.mrb[0].mxu0
        %v541 = vadd.f32 %v272, %v540
        %v542 = vpop.f32.mrb[0].mxu0
        %v543 = vadd.f32 %v268, %v542
        %v544 = vpop.f32.mrb[0].mxu0
        %v545 = vadd.f32 %v272, %v544
        %546 = vmatprep.mubr.bf16.mxu0 0
        %547 = vmatmul.mubr.bf16.gmra.mrb[0].mxu0 %v316
        %v548 = vpop.f32.mrb[0].mxu0
        %v549 = vadd.f32 %v268, %v548
        %v550 = vpop.f32.mrb[0].mxu0
        %v551 = vadd.f32 %v272, %v550
        %v552 = vpop.f32.mrb[0].mxu0
        %v553 = vadd.f32 %v268, %v552
        %v554 = vpop.f32.mrb[0].mxu0
        %v555 = vadd.f32 %v272, %v554
        %556 = vdwg.mxu0
        %v557 = vmax.f32 %v366, 0.0
        %v558 = vmax.f32 %v368, 0.0
        %v559 = vmax.f32 %v479, 0.0
        %v560 = vmax.f32 %v481, 0.0
        %v561 = vmax.f32 %v370, 0.0
        %v562 = vmax.f32 %v372, 0.0
        %v563 = vmax.f32 %v483, 0.0
        %v564 = vmax.f32 %v485, 0.0
        %v565 = vmax.f32 %v376, 0.0
        %v566 = vmax.f32 %v378, 0.0
        %v567 = vmax.f32 %v489, 0.0
        %v568 = vmax.f32 %v491, 0.0
        %v569 = vmax.f32 %v380, 0.0
        %v570 = vmax.f32 %v382, 0.0
        %v571 = vmax.f32 %v493, 0.0
        %v572 = vmax.f32 %v495, 0.0
        %v573 = vmax.f32 %v386, 0.0
        %v574 = vmax.f32 %v388, 0.0
        %v575 = vmax.f32 %v499, 0.0
        %v576 = vmax.f32 %v501, 0.0
        %v577 = vmax.f32 %v390, 0.0
        %v578 = vmax.f32 %v392, 0.0
        %v579 = vmax.f32 %v503, 0.0
        %v580 = vmax.f32 %v505, 0.0
        %v581 = vmax.f32 %v396, 0.0
        %v582 = vmax.f32 %v398, 0.0
        %v583 = vmax.f32 %v509, 0.0
        %v584 = vmax.f32 %v511, 0.0
        %v585 = vmax.f32 %v400, 0.0
        %v586 = vmax.f32 %v402, 0.0
        %v587 = vmax.f32 %v513, 0.0
        %v588 = vmax.f32 %v515, 0.0
        %v589 = vmax.f32 %v406, 0.0
        %v590 = vmax.f32 %v408, 0.0
        %v591 = vmax.f32 %v519, 0.0
        %v592 = vmax.f32 %v521, 0.0
        %v593 = vmax.f32 %v410, 0.0
        %v594 = vmax.f32 %v412, 0.0
        %v595 = vmax.f32 %v523, 0.0
        %v596 = vmax.f32 %v525, 0.0
        %v597 = vmax.f32 %v416, 0.0
        %v598 = vmax.f32 %v418, 0.0
        %v599 = vmax.f32 %v529, 0.0
        %v600 = vmax.f32 %v531, 0.0
        %v601 = vmax.f32 %v420, 0.0
        %v602 = vmax.f32 %v422, 0.0
        %v603 = vmax.f32 %v533, 0.0
        %v604 = vmax.f32 %v535, 0.0
        %v605 = vmax.f32 %v426, 0.0
        %v606 = vmax.f32 %v428, 0.0
        %v607 = vmax.f32 %v539, 0.0
        %v608 = vmax.f32 %v541, 0.0
        %v609 = vmax.f32 %v430, 0.0
        %v610 = vmax.f32 %v432, 0.0
        %v611 = vmax.f32 %v543, 0.0
        %v612 = vmax.f32 %v545, 0.0
        %v613 = vmax.f32 %v436, 0.0
        %v614 = vmax.f32 %v438, 0.0
        %v615 = vmax.f32 %v549, 0.0
        %v616 = vmax.f32 %v551, 0.0
        %v617 = vmax.f32 %v440, 0.0
        %v618 = vmax.f32 %v442, 0.0
        %v619 = vmax.f32 %v553, 0.0
        %v620 = vmax.f32 %v555, 0.0
        %v621 = vpack.c.bf16 %v561, %v557
        %v622 = vpack.c.bf16 %v562, %v558
        %v623 = vpack.c.bf16 %v563, %v559
        %v624 = vpack.c.bf16 %v564, %v560
        %v625 = vpack.c.bf16 %v569, %v565
        %v626 = vpack.c.bf16 %v570, %v566
        %v627 = vpack.c.bf16 %v571, %v567
        %v628 = vpack.c.bf16 %v572, %v568
        %v629 = vpack.c.bf16 %v577, %v573
        %v630 = vpack.c.bf16 %v578, %v574
        %v631 = vpack.c.bf16 %v579, %v575
        %v632 = vpack.c.bf16 %v580, %v576
        %v633 = vpack.c.bf16 %v585, %v581
        %v634 = vpack.c.bf16 %v586, %v582
        %v635 = vpack.c.bf16 %v587, %v583
        %v636 = vpack.c.bf16 %v588, %v584
        %v637 = vpack.c.bf16 %v593, %v589
        %v638 = vpack.c.bf16 %v594, %v590
        %v639 = vpack.c.bf16 %v595, %v591
        %v640 = vpack.c.bf16 %v596, %v592
        %v641 = vpack.c.bf16 %v601, %v597
        %v642 = vpack.c.bf16 %v602, %v598
        %v643 = vpack.c.bf16 %v603, %v599
        %v644 = vpack.c.bf16 %v604, %v600
        %v645 = vpack.c.bf16 %v609, %v605
        %v646 = vpack.c.bf16 %v610, %v606
        %v647 = vpack.c.bf16 %v611, %v607
        %v648 = vpack.c.bf16 %v612, %v608
        %v649 = vpack.c.bf16 %v617, %v613
        %v650 = vpack.c.bf16 %v618, %v614
        %v651 = vpack.c.bf16 %v619, %v615
        %v652 = vpack.c.bf16 %v620, %v616
        %v653 = vld [vmem:[%s3] sm:$0xf]
        %v654 = vld [vmem:[%s3 + $0x4] sm:$0xf]
        %v655 = vld [vmem:[%s3 + $0x8] sm:$0xf]
        %v656 = vld [vmem:[%s3 + $0xc] sm:$0xf]
        %v657 = vld [vmem:[%s3 + $0x10] sm:$0xf]
        %v658 = vld [vmem:[%s3 + $0x14] sm:$0xf]
        %v659 = vld [vmem:[%s3 + $0x18] sm:$0xf]
        %v660 = vld [vmem:[%s3 + $0x1c] sm:$0xf]
        %v661 = vld [vmem:[%s3 + $0x20] sm:$0xf]
        %v662 = vld [vmem:[%s3 + $0x24] sm:$0xf]
        %v663 = vld [vmem:[%s3 + $0x28] sm:$0xf]
        %v664 = vld [vmem:[%s3 + $0x2c] sm:$0xf]
        %v665 = vld [vmem:[%s3 + $0x30] sm:$0xf]
        %v666 = vld [vmem:[%s3 + $0x34] sm:$0xf]
        %v667 = vld [vmem:[%s3 + $0x38] sm:$0xf]
        %v668 = vld [vmem:[%s3 + $0x3c] sm:$0xf]
        %v669 = vld [vmem:[%s3 + $0x40] sm:$0xf]
        %v670 = vld [vmem:[%s3 + $0x44] sm:$0xf]
        %v671 = vld [vmem:[%s3 + $0x48] sm:$0xf]
        %v672 = vld [vmem:[%s3 + $0x4c] sm:$0xf]
        %v673 = vld [vmem:[%s3 + $0x50] sm:$0xf]
        %v674 = vld [vmem:[%s3 + $0x54] sm:$0xf]
        %v675 = vld [vmem:[%s3 + $0x58] sm:$0xf]
        %v676 = vld [vmem:[%s3 + $0x5c] sm:$0xf]
        %v677 = vld [vmem:[%s3 + $0x60] sm:$0xf]
        %v678 = vld [vmem:[%s3 + $0x64] sm:$0xf]
        %v679 = vld [vmem:[%s3 + $0x68] sm:$0xf]
        %v680 = vld [vmem:[%s3 + $0x6c] sm:$0xf]
        %v681 = vld [vmem:[%s3 + $0x70] sm:$0xf]
        %v682 = vld [vmem:[%s3 + $0x74] sm:$0xf]
        %v683 = vld [vmem:[%s3 + $0x78] sm:$0xf]
        %v684 = vld [vmem:[%s3 + $0x7c] sm:$0xf]
        %v685 = vld [vmem:[%s3 + $0x80] sm:$0xf]
        %v686 = vld [vmem:[%s3 + $0x84] sm:$0xf]
        %v687 = vld [vmem:[%s3 + $0x88] sm:$0xf]
        %v688 = vld [vmem:[%s3 + $0x8c] sm:$0xf]
        %v689 = vld [vmem:[%s3 + $0x90] sm:$0xf]
        %v690 = vld [vmem:[%s3 + $0x94] sm:$0xf]
        %v691 = vld [vmem:[%s3 + $0x98] sm:$0xf]
        %v692 = vld [vmem:[%s3 + $0x9c] sm:$0xf]
        %v693 = vld [vmem:[%s3 + $0xa0] sm:$0xf]
        %v694 = vld [vmem:[%s3 + $0xa4] sm:$0xf]
        %v695 = vld [vmem:[%s3 + $0xa8] sm:$0xf]
        %v696 = vld [vmem:[%s3 + $0xac] sm:$0xf]
        %v697 = vld [vmem:[%s3 + $0xb0] sm:$0xf]
        %v698 = vld [vmem:[%s3 + $0xb4] sm:$0xf]
        %v699 = vld [vmem:[%s3 + $0xb8] sm:$0xf]
        %v700 = vld [vmem:[%s3 + $0xbc] sm:$0xf]
        %v701 = vld [vmem:[%s3 + $0xc0] sm:$0xf]
        %v702 = vld [vmem:[%s3 + $0xc4] sm:$0xf]
        %v703 = vld [vmem:[%s3 + $0xc8] sm:$0xf]
        %v704 = vld [vmem:[%s3 + $0xcc] sm:$0xf]
        %v705 = vld [vmem:[%s3 + $0xd0] sm:$0xf]
        %v706 = vld [vmem:[%s3 + $0xd4] sm:$0xf]
        %v707 = vld [vmem:[%s3 + $0xd8] sm:$0xf]
        %v708 = vld [vmem:[%s3 + $0xdc] sm:$0xf]
        %v709 = vld [vmem:[%s3 + $0xe0] sm:$0xf]
        %v710 = vld [vmem:[%s3 + $0xe4] sm:$0xf]
        %v711 = vld [vmem:[%s3 + $0xe8] sm:$0xf]
        %v712 = vld [vmem:[%s3 + $0xec] sm:$0xf]
        %v713 = vld [vmem:[%s3 + $0xf0] sm:$0xf]
        %v714 = vld [vmem:[%s3 + $0xf4] sm:$0xf]
        %v715 = vld [vmem:[%s3 + $0xf8] sm:$0xf]
        %v716 = vld [vmem:[%s3 + $0xfc] sm:$0xf]
        %v717 = vld [vmem:[%s4] sm:$0x1]
        %v719 = vlaneseq
        %v720 = vshrl.u32 %v719, 7
        %v721 = vsub.s32 0, %v720
        %v722 = vrot.slane %v717, %v721
        %v788 = vunpack.c.l.b16 %v653
        %v789 = vunpack.c.l.b16 %v654
        %v790 = vunpack.c.l.b16 %v655
        %v791 = vunpack.c.l.b16 %v656
        %v792 = vunpack.c.l.b16 %v657
        %v793 = vunpack.c.l.b16 %v658
        %v794 = vunpack.c.l.b16 %v659
        %v795 = vunpack.c.l.b16 %v660
        %v796 = vunpack.c.l.b16 %v661
        %v797 = vunpack.c.l.b16 %v662
        %v798 = vunpack.c.l.b16 %v663
        %v799 = vunpack.c.l.b16 %v664
        %v800 = vunpack.c.l.b16 %v665
        %v801 = vunpack.c.l.b16 %v666
        %v802 = vunpack.c.l.b16 %v667
        %v803 = vunpack.c.l.b16 %v668
        %v804 = vunpack.c.l.b16 %v669
        %v805 = vunpack.c.l.b16 %v670
        %v806 = vunpack.c.l.b16 %v671
        %v807 = vunpack.c.l.b16 %v672
        %v808 = vunpack.c.l.b16 %v673
        %v809 = vunpack.c.l.b16 %v674
        %v810 = vunpack.c.l.b16 %v675
        %v811 = vunpack.c.l.b16 %v676
        %v812 = vunpack.c.l.b16 %v677
        %v813 = vunpack.c.l.b16 %v678
        %v814 = vunpack.c.l.b16 %v679
        %v815 = vunpack.c.l.b16 %v680
        %v816 = vunpack.c.l.b16 %v681
        %v817 = vunpack.c.l.b16 %v682
        %v818 = vunpack.c.l.b16 %v683
        %v819 = vunpack.c.l.b16 %v684
        %v820 = vunpack.c.l.b16 %v685
        %v821 = vunpack.c.l.b16 %v686
        %v822 = vunpack.c.l.b16 %v687
        %v823 = vunpack.c.l.b16 %v688
        %v824 = vunpack.c.l.b16 %v689
        %v825 = vunpack.c.l.b16 %v690
        %v826 = vunpack.c.l.b16 %v691
        %v827 = vunpack.c.l.b16 %v692
        %v828 = vunpack.c.l.b16 %v693
        %v829 = vunpack.c.l.b16 %v694
        %v830 = vunpack.c.l.b16 %v695
        %v831 = vunpack.c.l.b16 %v696
        %v832 = vunpack.c.l.b16 %v697
        %v833 = vunpack.c.l.b16 %v698
        %v834 = vunpack.c.l.b16 %v699
        %v835 = vunpack.c.l.b16 %v700
        %v836 = vunpack.c.l.b16 %v701
        %v837 = vunpack.c.l.b16 %v702
        %v838 = vunpack.c.l.b16 %v703
        %v839 = vunpack.c.l.b16 %v704
        %v840 = vunpack.c.l.b16 %v705
        %v841 = vunpack.c.l.b16 %v706
        %v842 = vunpack.c.l.b16 %v707
        %v843 = vunpack.c.l.b16 %v708
        %v844 = vunpack.c.l.b16 %v709
        %v845 = vunpack.c.l.b16 %v710
        %v846 = vunpack.c.l.b16 %v711
        %v847 = vunpack.c.l.b16 %v712
        %v848 = vunpack.c.l.b16 %v713
        %v849 = vunpack.c.l.b16 %v714
        %v850 = vunpack.c.l.b16 %v715
        %v851 = vunpack.c.l.b16 %v716
        %v852 = vpack.c.b16 %v789, %v788
        %v853 = vpack.c.b16 %v791, %v790
        %v854 = vpack.c.b16 %v793, %v792
        %v855 = vpack.c.b16 %v795, %v794
        %v856 = vpack.c.b16 %v797, %v796
        %v857 = vpack.c.b16 %v799, %v798
        %v858 = vpack.c.b16 %v801, %v800
        %v859 = vpack.c.b16 %v803, %v802
        %v860 = vpack.c.b16 %v805, %v804
        %v861 = vpack.c.b16 %v807, %v806
        %v862 = vpack.c.b16 %v809, %v808
        %v863 = vpack.c.b16 %v811, %v810
        %v864 = vpack.c.b16 %v813, %v812
        %v865 = vpack.c.b16 %v815, %v814
        %v866 = vpack.c.b16 %v817, %v816
        %v867 = vpack.c.b16 %v819, %v818
        %v868 = vpack.c.b16 %v821, %v820
        %v869 = vpack.c.b16 %v823, %v822
        %v870 = vpack.c.b16 %v825, %v824
        %v871 = vpack.c.b16 %v827, %v826
        %v872 = vpack.c.b16 %v829, %v828
        %v873 = vpack.c.b16 %v831, %v830
        %v874 = vpack.c.b16 %v833, %v832
        %v875 = vpack.c.b16 %v835, %v834
        %v876 = vpack.c.b16 %v837, %v836
        %v877 = vpack.c.b16 %v839, %v838
        %v878 = vpack.c.b16 %v841, %v840
        %v879 = vpack.c.b16 %v843, %v842
        %v880 = vpack.c.b16 %v845, %v844
        %v881 = vpack.c.b16 %v847, %v846
        %v882 = vpack.c.b16 %v849, %v848
        %v883 = vpack.c.b16 %v851, %v850
        %916 = vmatprep.subr.bf16.mxu0 0
        %917 = vmatpush1.bf16.msra.mxu0 %v852
        %918 = vmatprep.subr.bf16.mxu0 0
        %919 = vmatpush1.bf16.msra.mxu0 %v853
        %920 = vmatprep.subr.bf16.mxu0 0
        %921 = vmatpush1.bf16.msra.mxu0 %v854
        %922 = vmatprep.subr.bf16.mxu0 0
        %923 = vmatpush1.bf16.msra.mxu0 %v855
        %924 = vmatprep.subr.bf16.mxu0 0
        %925 = vmatpush1.bf16.msra.mxu0 %v856
        %926 = vmatprep.subr.bf16.mxu0 0
        %927 = vmatpush1.bf16.msra.mxu0 %v857
        %928 = vmatprep.subr.bf16.mxu0 0
        %929 = vmatpush1.bf16.msra.mxu0 %v858
        %930 = vmatprep.subr.bf16.mxu0 0
        %931 = vmatpush1.bf16.msra.mxu0 %v859
        %932 = vmatprep.subr.bf16.mxu0 0
        %933 = vmatpush1.bf16.msra.mxu0 %v860
        %934 = vmatprep.subr.bf16.mxu0 0
        %935 = vmatpush1.bf16.msra.mxu0 %v861
        %936 = vmatprep.subr.bf16.mxu0 0
        %937 = vmatpush1.bf16.msra.mxu0 %v862
        %938 = vmatprep.subr.bf16.mxu0 0
        %939 = vmatpush1.bf16.msra.mxu0 %v863
        %940 = vmatprep.subr.bf16.mxu0 0
        %941 = vmatpush1.bf16.msra.mxu0 %v864
        %942 = vmatprep.subr.bf16.mxu0 0
        %943 = vmatpush1.bf16.msra.mxu0 %v865
        %944 = vmatprep.subr.bf16.mxu0 0
        %945 = vmatpush1.bf16.msra.mxu0 %v866
        %946 = vmatprep.subr.bf16.mxu0 0
        %947 = vmatpush1.bf16.msra.mxu0 %v867
        %948 = vmatprep.mubr.bf16.mxu0 %v622
        %949 = vmatmul.mubr.bf16.gmra.mrb[0].mxu0 %v621
        %v950 = vpop.f32.mrb[0].mxu0
        %v951 = vadd.f32 %v722, %v950
        %v952 = vpop.f32.mrb[0].mxu0
        %v953 = vpop.f32.mrb[0].mxu0
        %v954 = vadd.f32 %v722, %v953
        %v955 = vpop.f32.mrb[0].mxu0
        %956 = vmatprep.mubr.bf16.mxu0 %v626
        %957 = vmatmul.mubr.bf16.gmra.mrb[0].mxu0 %v625
        %v958 = vpop.f32.mrb[0].mxu0
        %v959 = vadd.f32 %v722, %v958
        %v960 = vpop.f32.mrb[0].mxu0
        %v961 = vpop.f32.mrb[0].mxu0
        %v962 = vadd.f32 %v722, %v961
        %v963 = vpop.f32.mrb[0].mxu0
        %964 = vmatprep.mubr.bf16.mxu0 %v630
        %965 = vmatmul.mubr.bf16.gmra.mrb[0].mxu0 %v629
        %v966 = vpop.f32.mrb[0].mxu0
        %v967 = vadd.f32 %v722, %v966
        %v968 = vpop.f32.mrb[0].mxu0
        %v969 = vpop.f32.mrb[0].mxu0
        %v970 = vadd.f32 %v722, %v969
        %v971 = vpop.f32.mrb[0].mxu0
        %972 = vmatprep.mubr.bf16.mxu0 %v634
        %973 = vmatmul.mubr.bf16.gmra.mrb[0].mxu0 %v633
        %v974 = vpop.f32.mrb[0].mxu0
        %v975 = vadd.f32 %v722, %v974
        %v976 = vpop.f32.mrb[0].mxu0
        %v977 = vpop.f32.mrb[0].mxu0
        %v978 = vadd.f32 %v722, %v977
        %v979 = vpop.f32.mrb[0].mxu0
        %980 = vmatprep.mubr.bf16.mxu0 %v638
        %981 = vmatmul.mubr.bf16.gmra.mrb[0].mxu0 %v637
        %v982 = vpop.f32.mrb[0].mxu0
        %v983 = vadd.f32 %v722, %v982
        %v984 = vpop.f32.mrb[0].mxu0
        %v985 = vpop.f32.mrb[0].mxu0
        %v986 = vadd.f32 %v722, %v985
        %v987 = vpop.f32.mrb[0].mxu0
        %988 = vmatprep.mubr.bf16.mxu0 %v642
        %989 = vmatmul.mubr.bf16.gmra.mrb[0].mxu0 %v641
        %v990 = vpop.f32.mrb[0].mxu0
        %v991 = vadd.f32 %v722, %v990
        %v992 = vpop.f32.mrb[0].mxu0
        %v993 = vpop.f32.mrb[0].mxu0
        %v994 = vadd.f32 %v722, %v993
        %v995 = vpop.f32.mrb[0].mxu0
        %996 = vmatprep.mubr.bf16.mxu0 %v646
        %997 = vmatmul.mubr.bf16.gmra.mrb[0].mxu0 %v645
        %v998 = vpop.f32.mrb[0].mxu0
        %v999 = vadd.f32 %v722, %v998
        %v1000 = vpop.f32.mrb[0].mxu0
        %v1001 = vpop.f32.mrb[0].mxu0
        %v1002 = vadd.f32 %v722, %v1001
        %v1003 = vpop.f32.mrb[0].mxu0
        %1004 = vmatprep.mubr.bf16.mxu0 %v650
        %1005 = vmatmul.mubr.bf16.gmra.mrb[0].mxu0 %v649
        %v1006 = vpop.f32.mrb[0].mxu0
        %v1007 = vadd.f32 %v722, %v1006
        %v1008 = vpop.f32.mrb[0].mxu0
        %v1009 = vpop.f32.mrb[0].mxu0
        %v1010 = vadd.f32 %v722, %v1009
        %v1011 = vpop.f32.mrb[0].mxu0
        %1012 = vdwg.mxu0
        %1013 = vmatprep.subr.bf16.mxu0 0
        %1014 = vmatpush1.bf16.msra.mxu0 %v868
        %1015 = vmatprep.subr.bf16.mxu0 0
        %1016 = vmatpush1.bf16.msra.mxu0 %v869
        %1017 = vmatprep.subr.bf16.mxu0 0
        %1018 = vmatpush1.bf16.msra.mxu0 %v870
        %1019 = vmatprep.subr.bf16.mxu0 0
        %1020 = vmatpush1.bf16.msra.mxu0 %v871
        %1021 = vmatprep.subr.bf16.mxu0 0
        %1022 = vmatpush1.bf16.msra.mxu0 %v872
        %1023 = vmatprep.subr.bf16.mxu0 0
        %1024 = vmatpush1.bf16.msra.mxu0 %v873
        %1025 = vmatprep.subr.bf16.mxu0 0
        %1026 = vmatpush1.bf16.msra.mxu0 %v874
        %1027 = vmatprep.subr.bf16.mxu0 0
        %1028 = vmatpush1.bf16.msra.mxu0 %v875
        %1029 = vmatprep.subr.bf16.mxu0 0
        %1030 = vmatpush1.bf16.msra.mxu0 %v876
        %1031 = vmatprep.subr.bf16.mxu0 0
        %1032 = vmatpush1.bf16.msra.mxu0 %v877
        %1033 = vmatprep.subr.bf16.mxu0 0
        %1034 = vmatpush1.bf16.msra.mxu0 %v878
        %1035 = vmatprep.subr.bf16.mxu0 0
        %1036 = vmatpush1.bf16.msra.mxu0 %v879
        %1037 = vmatprep.subr.bf16.mxu0 0
        %1038 = vmatpush1.bf16.msra.mxu0 %v880
        %1039 = vmatprep.subr.bf16.mxu0 0
        %1040 = vmatpush1.bf16.msra.mxu0 %v881
        %1041 = vmatprep.subr.bf16.mxu0 0
        %1042 = vmatpush1.bf16.msra.mxu0 %v882
        %1043 = vmatprep.subr.bf16.mxu0 0
        %1044 = vmatpush1.bf16.msra.mxu0 %v883
        %1045 = vmatprep.mubr.bf16.mxu0 %v624
        %1046 = vmatmul.mubr.bf16.gmra.mrb[0].mxu0 %v623
        %v1047 = vpop.f32.mrb[0].mxu0
        %v1048 = vadd.f32 %v951, %v1047
        %v1049 = vpop.f32.mrb[0].mxu0
        %v1050 = vpop.f32.mrb[0].mxu0
        %v1051 = vadd.f32 %v954, %v1050
        %v1052 = vpop.f32.mrb[0].mxu0
        %1053 = vmatprep.mubr.bf16.mxu0 %v628
        %1054 = vmatmul.mubr.bf16.gmra.mrb[0].mxu0 %v627
        %v1055 = vpop.f32.mrb[0].mxu0
        %v1056 = vadd.f32 %v959, %v1055
        %v1057 = vpop.f32.mrb[0].mxu0
        %v1058 = vpop.f32.mrb[0].mxu0
        %v1059 = vadd.f32 %v962, %v1058
        %v1060 = vpop.f32.mrb[0].mxu0
        %1061 = vmatprep.mubr.bf16.mxu0 %v632
        %1062 = vmatmul.mubr.bf16.gmra.mrb[0].mxu0 %v631
        %v1063 = vpop.f32.mrb[0].mxu0
        %v1064 = vadd.f32 %v967, %v1063
        %v1065 = vpop.f32.mrb[0].mxu0
        %v1066 = vpop.f32.mrb[0].mxu0
        %v1067 = vadd.f32 %v970, %v1066
        %v1068 = vpop.f32.mrb[0].mxu0
        %1069 = vmatprep.mubr.bf16.mxu0 %v636
        %1070 = vmatmul.mubr.bf16.gmra.mrb[0].mxu0 %v635
        %v1071 = vpop.f32.mrb[0].mxu0
        %v1072 = vadd.f32 %v975, %v1071
        %v1073 = vpop.f32.mrb[0].mxu0
        %v1074 = vpop.f32.mrb[0].mxu0
        %v1075 = vadd.f32 %v978, %v1074
        %v1076 = vpop.f32.mrb[0].mxu0
        %1077 = vmatprep.mubr.bf16.mxu0 %v640
        %1078 = vmatmul.mubr.bf16.gmra.mrb[0].mxu0 %v639
        %v1079 = vpop.f32.mrb[0].mxu0
        %v1080 = vadd.f32 %v983, %v1079
        %v1081 = vpop.f32.mrb[0].mxu0
        %v1082 = vpop.f32.mrb[0].mxu0
        %v1083 = vadd.f32 %v986, %v1082
        %v1084 = vpop.f32.mrb[0].mxu0
        %1085 = vmatprep.mubr.bf16.mxu0 %v644
        %1086 = vmatmul.mubr.bf16.gmra.mrb[0].mxu0 %v643
        %v1087 = vpop.f32.mrb[0].mxu0
        %v1088 = vadd.f32 %v991, %v1087
        %v1089 = vpop.f32.mrb[0].mxu0
        %v1090 = vpop.f32.mrb[0].mxu0
        %v1091 = vadd.f32 %v994, %v1090
        %v1092 = vpop.f32.mrb[0].mxu0
        %1093 = vmatprep.mubr.bf16.mxu0 %v648
        %1094 = vmatmul.mubr.bf16.gmra.mrb[0].mxu0 %v647
        %v1095 = vpop.f32.mrb[0].mxu0
        %v1096 = vadd.f32 %v999, %v1095
        %v1097 = vpop.f32.mrb[0].mxu0
        %v1098 = vpop.f32.mrb[0].mxu0
        %v1099 = vadd.f32 %v1002, %v1098
        %v1100 = vpop.f32.mrb[0].mxu0
        %1101 = vmatprep.mubr.bf16.mxu0 %v652
        %1102 = vmatmul.mubr.bf16.gmra.mrb[0].mxu0 %v651
        %v1103 = vpop.f32.mrb[0].mxu0
        %v1104 = vadd.f32 %v1007, %v1103
        %v1105 = vpop.f32.mrb[0].mxu0
        %v1106 = vpop.f32.mrb[0].mxu0
        %v1107 = vadd.f32 %v1010, %v1106
        %v1108 = vpop.f32.mrb[0].mxu0
        %1109 = vdwg.mxu0
        %v1110 = vpack.c.bf16 %v1051, %v1048
        %v1111 = vpack.c.bf16 %v1059, %v1056
        %v1112 = vpack.c.bf16 %v1067, %v1064
        %v1113 = vpack.c.bf16 %v1075, %v1072
        %v1114 = vpack.c.bf16 %v1083, %v1080
        %v1115 = vpack.c.bf16 %v1091, %v1088
        %v1116 = vpack.c.bf16 %v1099, %v1096
        %v1117 = vpack.c.bf16 %v1107, %v1104
        %v1126 = vunpack.c.l.b16 %v1110
        %v1127 = vunpack.c.h.b16 %v1110
        %v1128 = vunpack.c.l.b16 %v1111
        %v1129 = vunpack.c.h.b16 %v1111
        %v1130 = vunpack.c.l.b16 %v1112
        %v1131 = vunpack.c.h.b16 %v1112
        %v1132 = vunpack.c.l.b16 %v1113
        %v1133 = vunpack.c.h.b16 %v1113
        %v1134 = vunpack.c.l.b16 %v1114
        %v1135 = vunpack.c.h.b16 %v1114
        %v1136 = vunpack.c.l.b16 %v1115
        %v1137 = vunpack.c.h.b16 %v1115
        %v1138 = vunpack.c.l.b16 %v1116
        %v1139 = vunpack.c.h.b16 %v1116
        %v1140 = vunpack.c.l.b16 %v1117
        %v1141 = vunpack.c.h.b16 %v1117
        %v1142 = vpack.c.b16 %v1126, %v1126
        %v1143 = vpack.c.b16 %v1127, %v1127
        %v1144 = vpack.c.b16 %v1128, %v1128
        %v1145 = vpack.c.b16 %v1129, %v1129
        %v1146 = vpack.c.b16 %v1130, %v1130
        %v1147 = vpack.c.b16 %v1131, %v1131
        %v1148 = vpack.c.b16 %v1132, %v1132
        %v1149 = vpack.c.b16 %v1133, %v1133
        %v1150 = vpack.c.b16 %v1134, %v1134
        %v1151 = vpack.c.b16 %v1135, %v1135
        %v1152 = vpack.c.b16 %v1136, %v1136
        %v1153 = vpack.c.b16 %v1137, %v1137
        %v1154 = vpack.c.b16 %v1138, %v1138
        %v1155 = vpack.c.b16 %v1139, %v1139
        %v1156 = vpack.c.b16 %v1140, %v1140
        %v1157 = vpack.c.b16 %v1141, %v1141
        %1174 = vst [vmem:[%s218] sm:$0xf] %v1142
        %1175 = vst [vmem:[%s218 + $0x4] sm:$0xf] %v1143
        %1176 = vst [vmem:[%s218 + $0x8] sm:$0xf] %v1144
        %1177 = vst [vmem:[%s218 + $0xc] sm:$0xf] %v1145
        %1178 = vst [vmem:[%s218 + $0x10] sm:$0xf] %v1146
        %1179 = vst [vmem:[%s218 + $0x14] sm:$0xf] %v1147
        %1180 = vst [vmem:[%s218 + $0x18] sm:$0xf] %v1148
        %1181 = vst [vmem:[%s218 + $0x1c] sm:$0xf] %v1149
        %1182 = vst [vmem:[%s218 + $0x20] sm:$0xf] %v1150
        %1183 = vst [vmem:[%s218 + $0x24] sm:$0xf] %v1151
        %1184 = vst [vmem:[%s218 + $0x28] sm:$0xf] %v1152
        %1185 = vst [vmem:[%s218 + $0x2c] sm:$0xf] %v1153
        %1186 = vst [vmem:[%s218 + $0x30] sm:$0xf] %v1154
        %1187 = vst [vmem:[%s218 + $0x34] sm:$0xf] %v1155
        %1188 = vst [vmem:[%s218 + $0x38] sm:$0xf] %v1156
        %1189 = vst [vmem:[%s218 + $0x3c] sm:$0xf] %v1157
        %s1190 = sand.u32 %s137, 1
        %s1191 = scalar_lea.sflag [#allocation3], %s1190
        %s1192 = sand.u32 %s137, 1
        %s1193 = smul.addr %s1192, 64
        %s1194 = scalar_lea.vmem [#allocation2], %s1193
        // Predicated region
        $region41: #{tpu_custom_call.1} parent=39 // pred_check
          %p1195 = pneg %p147
        $region42: #{tpu_custom_call.1} parent=39 // pred_check_branch
          %1197 = sbr.rel (%p1195) target = $region44
        $region43: #{tpu_custom_call.1} parent=39 // pred_region
          %s1198 = smul.u32 16, %s19
          %s1200 = ssub.s32 1024, 1024
          %1201 = vsyncadd %s1191, %s1200
          %s1202 = smul.addr %s1198, 64
          %s1203 = scalar_lea.hbm %s5, %s1202
          %s1204 = sshll.u32 %s1194, 4
          %s1205 = int_to_ptr.vmem [resolvable:$true] %s1204
          %1210 = dma.vmem_to_hbm [thread:$0]  %s1205, 1024, %s1203, %s1191, 64, 64, 4
        $region44: #{tpu_custom_call.1} parent=39 // pred_fallthru
          _
      $region40: #{tpu_custom_call.1} parent=5 // pred_fallthru
        _
      %p1211 = scmp.le.s32.totalorder 2, %s14
      // Predicated region
      $region45: #{tpu_custom_call.1} parent=5 // pred_check
        %p1212 = pneg %p1211
      $region46: #{tpu_custom_call.1} parent=5 // pred_check_branch
        %1214 = sbr.rel (%p1212) target = $region48
      $region47: #{tpu_custom_call.1} parent=5 // pred_region
        %s1215 = ssub.s32 %s14, 2
        // Predicated region
        $region49: #{tpu_custom_call.1} parent=47 // pred_check
          %p1216 = pneg %p153
        $region50: #{tpu_custom_call.1} parent=47 // pred_check_branch
          %1218 = sbr.rel (%p1216) target = $region52
        $region51: #{tpu_custom_call.1} parent=47 // pred_region
          %s1219 = sand.u32 %s138, 1
          %s1220 = scalar_lea.sflag [#allocation3], %s1219
          %s1221 = sand.u32 %s138, 1
          %s1222 = smul.addr %s1221, 64
          %s1223 = scalar_lea.vmem [#allocation2], %s1222
          %1224 = dma.done %s1220, 1024
        $region52: #{tpu_custom_call.1} parent=47 // pred_fallthru
          _
      $region48: #{tpu_custom_call.1} parent=5 // pred_fallthru
        _
    $region6: #{tpu_custom_call.1} parent=1 // loop_footer
      %s18 = sadd.s32 1, %s14
    $region7: #{tpu_custom_call.1} parent=1 // loop_footer_branch
      %13 = sbr.rel target = $region3
    $region8: #{tpu_custom_call.1} parent=1 // loop_exit
      _
    %1225 = vsyncpa [#allocation3], 1
    %s1226 = scalar_lea.sflag [#allocation3], 1
    %1227 = vsyncpa %s1226, 1

</llo_original>
